<compile_context>
chip_gen: v6e
topology: v6e:2x2x1
jax: 0.10.0
libtpu: 0.0.40
codegen_flags: <defaults>
</compile_context>

<pallas_src>
import functools

import jax
import jax.numpy as jnp
from jax.experimental import pallas as pl
from jax.experimental.pallas import tpu as pltpu

C_IN = 4
C_MID = 8
KS = 4
NEG_SLOPE = 0.2
LANE = 128

# The 9 (dh, dw) spatial shifts used by both convs after the stride-2 phase decomposition.
_SHIFTS9 = tuple((dh, dw) for dh in (-1, 0, 1) for dw in (-1, 0, 1))

# Conv2d(k=4, s=2, p=1): input row ih = 2*p + kh - 1 = 2*(p + dh) + a  =>  kh -> (parity a, shift dh)
_DOWN_TAP = {0: (1, -1), 1: (0, 0), 2: (1, 0), 3: (0, 1)}

# ConvTranspose2d(k=4, s=2, p=1): output phase r uses (shift dh, kernel row kh)
_UP_TAPS = (((0, 1), (-1, 3)),   # r == 0
            ((0, 2), (1, 0)))    # r == 1


# -------------------------- roll-direction probe ------------------------------
@functools.lru_cache(maxsize=None)
def _roll_dir():
    """We need shifted[i] = x[i + delta].  Returns d so that
    pltpu.roll(x, (d * delta) % n, axis=lane) implements that on this JAX/Mosaic build."""
    def k(x_ref, o_ref):
        o_ref[...] = pltpu.roll(x_ref[...], 1, axis=1)

    x = jnp.broadcast_to(jnp.arange(LANE, dtype=jnp.float32)[None, :], (8, LANE))
    out = pl.pallas_call(k, out_shape=jax.ShapeDtypeStruct((8, LANE), jnp.float32))(x)
    # jnp.roll convention (out[0] == x[-1]): shift by -delta.  Otherwise shift by +delta.
    return -1 if int(out[0, 0]) == LANE - 1 else 1


# ------------------------------ Pallas kernel ---------------------------------
def _fused_unet_kernel(q_ref, xph_ref, wd_ref, bd_ref, wu_ref, bu_ref, out_ref,
                       *, ho, wo, roll_dir):
    """down-conv + LeakyReLU + 4-phase transposed-conv + ReLU; y never leaves VMEM.

    Layout: channels / taps on sublanes, flattened zero-padded spatial on lanes.
      q_ref   (1, HWP) int32       lane index -> q = i % wo (precomputed)
      xph_ref (B, 16, HWP)         stride-2 phase-split input, rows = (a*2+b)*C_IN + ci
      wd_ref  (8, 144)             down conv packed over (shift, phase, ci)
      bd_ref  (8, 1) f32
      wu_ref  (16, 72) f32         up conv packed over (shift, c_mid), rows = (r*2+s)*C_IN + co
      bu_ref  (16, 1) f32
      out_ref (B, 16, HWP) f32     rows = (r*2+s)*C_IN + co
    """
    hwp = q_ref.shape[-1]
    q = q_ref[...]                                                   # (1, HWP) int32
    flat = jax.lax.broadcasted_iota(jnp.int32, (1, hwp), 1)
    w_ok = {-1: q >= 1, 0: None, 1: q <= wo - 2}
    h_ok = {-1: flat >= wo, 0: None, 1: flat < (ho - 1) * wo}

    def taps(arr):
        """The 9 (+-1, +-1) shifted, zero-boundary-masked copies, stacked along sublanes."""
        pieces = []
        for dh, dw in _SHIFTS9:
            delta = dh * wo + dw
            s = arr if delta == 0 else pltpu.roll(arr, (roll_dir * delta) % hwp, axis=1)
            m = h_ok[dh]
            if w_ok[dw] is not None:
                m = w_ok[dw] if m is None else jnp.logical_and(m, w_ok[dw])
            if m is not None:
                s = jnp.where(m, s, jnp.zeros_like(s))
            pieces.append(s)
        return jnp.concatenate(pieces, axis=0)

    wd = wd_ref[...]
    wu = wu_ref[...]
    bd = bd_ref[...]
    bu = bu_ref[...]

    for b in range(xph_ref.shape[0]):                                # static: images per step
        # ---- down: Conv2d(4, 8, 4, s=2, p=1) + LeakyReLU(0.2), one fused MXU dot ----
        x_taps = taps(xph_ref[b])                                    # (144, HWP)
        y = jnp.dot(wd, x_taps, preferred_element_type=jnp.float32) + bd
        y = jnp.where(y >= 0.0, y, NEG_SLOPE * y)                    # (8, HWP) f32, stays on-chip

        # ---- up: ConvTranspose2d(8, 4, 4, s=2, p=1) + ReLU, all 4 phases in one dot ----
        y_taps = taps(y)                                             # (72, HWP) f32
        up = jnp.dot(wu, y_taps, preferred_element_type=jnp.float32) + bu
        out_ref[b] = jnp.maximum(up, 0.0).astype(out_ref.dtype)      # (16, HWP), lane-dense store


# ------------------------------ glue (JAX) ------------------------------------
def _pick_block_images(n):
    """Batch several small images per grid step (amortize ~0.35us/step) but keep >= 2 steps."""
    for b in (8, 4, 2):
        if n % b == 0 and n // b >= 2:
            return b
    return 1


def _phase_split(x_nchw, ho, wo, hwp, compute_dtype):
    """x[n, ci, 2p+a, 2q+b] -> xph[n, (a*2+b)*C_IN + ci, p*wo + q]  (zero-padded to HWP lanes)."""
    n = x_nchw.shape[0]
    ph = jnp.stack([x_nchw[:, :, a::2, b::2] for a in (0, 1) for b in (0, 1)], axis=1)
    ph = ph.reshape(n, 4 * C_IN, ho * wo)
    if hwp > ho * wo:
        ph = jnp.pad(ph, ((0, 0), (0, 0), (0, hwp - ho * wo)))
    return ph.astype(compute_dtype)


def _pack_weights(params, compute_dtype):
    """Pack both convs into single big-K matrices keyed by (shift, phase/channel)."""
    w_down = params["w_down"].astype(jnp.float32)                    # (C_MID, C_IN, kh, kw)
    w_up = params["w_up"].astype(jnp.float32)                        # (C_MID, C_IN, kh, kw)

    wd = jnp.zeros((C_MID, 9 * 4 * C_IN), jnp.float32)
    for kh in range(KS):
        a, dh = _DOWN_TAP[kh]
        for kw in range(KS):
            b, dw = _DOWN_TAP[kw]
            col = _SHIFTS9.index((dh, dw)) * (4 * C_IN) + (a * 2 + b) * C_IN
            wd = wd.at[:, col:col + C_IN].set(w_down[:, :, kh, kw])

    wu = jnp.zeros((4 * C_IN, 9 * C_MID), jnp.float32)
    for r in range(2):
        for s in range(2):
            row = (2 * r + s) * C_IN
            for dh, kh in _UP_TAPS[r]:
                for dw, kw in _UP_TAPS[s]:
                    col = _SHIFTS9.index((dh, dw)) * C_MID
                    wu = wu.at[row:row + C_IN, col:col + C_MID].set(w_up[:, :, kh, kw].T)

    bd = params["b_down"].reshape(C_MID, 1).astype(jnp.float32)
    bu = jnp.tile(params["b_up"].astype(jnp.float32), 4).reshape(4 * C_IN, 1)
    # Up weights / activations stay f32 (v5e-friendly); only the streamed operands go bf16.
    return wd.astype(compute_dtype), bd, wu, bu


def _build_call(n, b_imgs, hwp, ho, wo, single_buffer_consts):
    const_kw = {"pipeline_mode": pl.Buffered(1)} if single_buffer_consts else {}
    kernel = functools.partial(_fused_unet_kernel, ho=ho, wo=wo, roll_dir=_roll_dir())
    return pl.pallas_call(
        kernel,
        out_shape=jax.ShapeDtypeStruct((n, 4 * C_IN, hwp), jnp.float32),
        grid_spec=pltpu.PrefetchScalarGridSpec(
            num_scalar_prefetch=0,
            grid=(n // b_imgs,),
            in_specs=[
                pl.BlockSpec((1, hwp), lambda i: (0, 0), **const_kw),
                pl.BlockSpec((b_imgs, 4 * C_IN, hwp), lambda i: (i, 0, 0)),
                pl.BlockSpec((C_MID, 9 * 4 * C_IN), lambda i: (0, 0), **const_kw),
                pl.BlockSpec((C_MID, 1), lambda i: (0, 0), **const_kw),
                pl.BlockSpec((4 * C_IN, 9 * C_MID), lambda i: (0, 0), **const_kw),
                pl.BlockSpec((4 * C_IN, 1), lambda i: (0, 0), **const_kw),
            ],
            out_specs=pl.BlockSpec((b_imgs, 4 * C_IN, hwp), lambda i: (i, 0, 0)),
        ),
        compiler_params=pltpu.CompilerParams(dimension_semantics=("parallel",)),
    )


def minimal_unet_v2_forward(params, x_nchw, mask=None, withoutskip=False,
                            compute_dtype=jnp.bfloat16):
    """Reproduces MinimalUnetV2.forward with submodule=None, attention=None."""
    n, c, h, w = x_nchw.shape
    assert c == C_IN and h % 2 == 0 and w % 2 == 0, "expects NCHW input with even H and W"
    ho, wo = h // 2, w // 2
    hw = ho * wo
    hwp = ((hw + LANE - 1) // LANE) * LANE        # lane-pad flattened spatial (garbage lanes dropped)
    b_imgs = _pick_block_images(n)

    xph = _phase_split(x_nchw, ho, wo, hwp, compute_dtype)
    wd, bd, wu, bu = _pack_weights(params, compute_dtype)
    q_idx = (jnp.arange(hwp, dtype=jnp.int32) % wo).reshape(1, hwp)

    args = (q_idx, xph, wd, bd, wu, bu)
    try:
        out = _build_call(n, b_imgs, hwp, ho, wo, True)(*args)
    except Exception:
        # Fallback for JAX builds that reject single-buffered (pl.Buffered(1)) block specs.
        out = _build_call(n, b_imgs, hwp, ho, wo, False)(*args)

    # Interleave the 4 sub-pixel phases back to NCHW; XLA fuses this copy with the skip concat.
    # TODO(synk): emit the phase-interleaved NCHW layout (and the skip concat) directly from the
    # kernel with strided sublane stores to drop this last XLA pass entirely.
    up = (out[:, :, :hw].reshape(n, 2, 2, C_IN, ho, wo)
          .transpose(0, 3, 4, 1, 5, 2)
          .reshape(n, C_IN, h, w)
          .astype(x_nchw.dtype))

    if withoutskip:
        return up
    # is_attention == False path: x_out = (torch.cat([x, self.up(x_up)], 1), mask)
    return jnp.concatenate([x_nchw, up], axis=1), mask


# ------------------------- pure-jnp reference (check) -------------------------
def _im2col(x_pad, k, stride, ho, wo):
    n, _, _, c = x_pad.shape
    cols = []
    for kh in range(k):
        for kw in range(k):
            cols.append(x_pad[:, kh:kh + stride * ho:stride, kw:kw + stride * wo:stride, :])
    patches = jnp.stack(cols, axis=3)
    return patches.reshape(n * ho * wo, k * k * c)


def minimal_unet_v2_forward_ref(params, x_nchw, mask=None):
    """Independent formulation: im2col GEMM conv + zero-dilated stride-1 conv with the
    flipped / in-out-swapped kernel for the transposed conv."""
    x = jnp.transpose(x_nchw, (0, 2, 3, 1))
    n, h, w, _ = x.shape
    ho, wo = h // 2, w // 2

    x_pad = jnp.pad(x, ((0, 0), (1, 1), (1, 1), (0, 0)))
    pat_d = _im2col(x_pad, KS, 2, ho, wo)
    w_d = params["w_down"].transpose(2, 3, 1, 0).reshape(KS * KS * C_IN, C_MID)
    y = pat_d @ w_d + params["b_down"][None, :]
    y = jnp.where(y >= 0.0, y, NEG_SLOPE * y).reshape(n, ho, wo, C_MID)

    yd = jnp.zeros((n, 2 * ho - 1, 2 * wo - 1, C_MID), y.dtype)
    yd = yd.at[:, ::2, ::2, :].set(y)
    yd = jnp.pad(yd, ((0, 0), (2, 2), (2, 2), (0, 0)))
    pat_u = _im2col(yd, KS, 1, h, w)
    wf = jnp.flip(params["w_up"], axis=(2, 3))
    w_u = wf.transpose(2, 3, 0, 1).reshape(KS * KS * C_MID, C_IN)
    x_up = jnp.maximum(pat_u @ w_u + params["b_up"][None, :], 0.0).reshape(n, h, w, C_IN)
    x_up_nchw = jnp.transpose(x_up, (0, 3, 1, 2))
    return jnp.concatenate([x_nchw, x_up_nchw], axis=1), mask


def init_params(key):
    k1, k2, k3, k4 = jax.random.split(key, 4)
    return {
        # Conv2d(C_IN, C_MID, 4): weight (Cout, Cin, kh, kw)
        "w_down": 0.1 * jax.random.normal(k1, (C_MID, C_IN, KS, KS), jnp.float32),
        "b_down": 0.1 * jax.random.normal(k2, (C_MID,), jnp.float32),
        # ConvTranspose2d(C_MID, C_IN, 4): weight (Cin, Cout, kh, kw)
        "w_up": 0.1 * jax.random.normal(k3, (C_MID, C_IN, KS, KS), jnp.float32),
        "b_up": 0.1 * jax.random.normal(k4, (C_IN,), jnp.float32),
    }


if __name__ == "__main__":
    key = jax.random.PRNGKey(0)
    kp, kx = jax.random.split(key)
    params = init_params(kp)
    x = jax.random.normal(kx, (2, C_IN, 16, 16), jnp.float32)  # NCHW, like PyTorch

    ref, _ = minimal_unet_v2_forward_ref(params, x, mask=None)
    ref = jax.block_until_ready(ref)

    # float32 path: tight check of the fused kernel against the im2col reference.
    out32, mask_out = minimal_unet_v2_forward(params, x, mask=None, compute_dtype=jnp.float32)
    out32 = jax.block_until_ready(out32)
    assert out32.shape == (2, 2 * C_IN, 16, 16), out32.shape
    assert mask_out is None
    assert jnp.allclose(out32, ref, rtol=1e-4, atol=1e-4), float(jnp.max(jnp.abs(out32 - ref)))

    # bf16 streamed-operand path (production default; accumulation stays f32).
    out_bf, _ = minimal_unet_v2_forward(params, x, mask=None, compute_dtype=jnp.bfloat16)
    out_bf = jax.block_until_ready(out_bf)
    assert jnp.allclose(out_bf, ref, rtol=5e-2, atol=5e-2), float(jnp.max(jnp.abs(out_bf - ref)))

    print("KERNEL_OK")
</pallas_src>

<mosaic_0001>
module attributes {stable_mosaic.version = 11 : i64} {
  func.func @k(%arg0: memref<8x128xf32, #tpu.memory_space<vmem>>, %arg1: memref<8x128xf32, #tpu.memory_space<vmem>>) attributes {dimension_semantics = [], scalar_prefetch = 0 : i64, scratch_operands = 0 : i64, tpu.core_type = #tpu.core_type<tc>} {
    %c0 = arith.constant 0 : index
    %c0_0 = arith.constant 0 : index
    %0 = vector.load %arg0[%c0, %c0_0] : memref<8x128xf32, #tpu.memory_space<vmem>>, vector<8x128xf32>
    %c1_i32 = arith.constant 1 : i32
    %1 = tpu.dynamic_rotate %0 by %c1_i32 dim 1 : vector<8x128xf32>, i32 -> vector<8x128xf32>
    %c0_1 = arith.constant 0 : index
    %c0_2 = arith.constant 0 : index
    %2 = vector.load %arg1[%c0_1, %c0_2] : memref<8x128xf32, #tpu.memory_space<vmem>>, vector<8x128xf32>
    tpu.vector_store %arg1[%c0_1, %c0_2], %1 {strides = array<i32>} : memref<8x128xf32, #tpu.memory_space<vmem>>, vector<8x128xf32>,
    return
  }
}

module attributes {stable_mosaic.version = 11 : i64} {
  func.func @k(%arg0: memref<8x128xf32, #tpu.memory_space<vmem>>, %arg1: memref<8x128xf32, #tpu.memory_space<vmem>>) attributes {dimension_semantics = [], scalar_prefetch = 0 : i64, scratch_operands = 0 : i64, tpu.core_type = #tpu.core_type<tc>} {
    %c0 = arith.constant 0 : index
    %c0_0 = arith.constant 0 : index
    %0 = vector.load %arg0[%c0, %c0_0] : memref<8x128xf32, #tpu.memory_space<vmem>>, vector<8x128xf32>
    %c1_i32 = arith.constant 1 : i32
    %1 = tpu.dynamic_rotate %0 by %c1_i32 dim 1 : vector<8x128xf32>, i32 -> vector<8x128xf32>
    %c0_1 = arith.constant 0 : index
    %c0_2 = arith.constant 0 : index
    %2 = vector.load %arg1[%c0_1, %c0_2] : memref<8x128xf32, #tpu.memory_space<vmem>>, vector<8x128xf32>
    tpu.vector_store %arg1[%c0_1, %c0_2], %1 {strides = array<i32>} : memref<8x128xf32, #tpu.memory_space<vmem>>, vector<8x128xf32>,
    return
  }
}

</mosaic_0001>

<llo_original>
// kernel: tpu_custom_call.1
$region0: #{tpu_custom_call.1}
  #allocation0 [shape = 'u32[]', space=smem, size = 0x4, offset = 0x4, fixed_abs, tag = 'smem constant byte address 0x4 - core index']
  #allocation1 [shape = 'u32[144,128]{1,0:T(1,128)}', space=vmem, size = 0x12000, scoped, tag = 'internal scratch']
  %s0 = inlined_call_operand.hbm [shape: f32[8,128], index: 0, kind: input, shape index: {}]
  %s1 = inlined_call_operand.hbm [shape: f32[8,128], index: 1, kind: output, shape index: {}]
  %s2 = sld [smem:[#allocation0]]
  $region18: #{tpu_custom_call.1} parent=0
    _
  %s4 = ssub.s32 1, %s2
  %s5 = scalar_select 0, %s4, %s2
  $region1: #{tpu_custom_call.1} parent=0
    #allocation2 [shape = 'u8[4096]{0}', space=vmem, size = 0x1000, scoped, tag = 'input window, operand 0, single buffered']
    #allocation3 [shape = 's32[1]{0}', space=sflag, size = 0x4, scoped, tag = 'scoped memory for tpu_custom_call.1']
    #allocation4 [shape = 's32[1]{0}', space=sflag, size = 0x4, scoped, tag = 'scoped memory for tpu_custom_call.1']
    #allocation5 [shape = 'u8[4096]{0}', space=vmem, size = 0x1000, scoped, tag = 'output window, operand 0, single buffered']
    %6 = vsyncpa [#allocation3], 0
    %7 = vsyncpa [#allocation4], 0
    // Predicated region
    $region2: #{tpu_custom_call.1} parent=1 // pred_check
      _
    $region3: #{tpu_custom_call.1} parent=1 // pred_check_branch
      %9 = sbr.rel (0) target = $region5
    $region4: #{tpu_custom_call.1} parent=1 // pred_region
      %s11 = ssub.s32 128, 128
      %12 = vsyncadd [#allocation3], %s11
      %s14 = sshll.u32 [#allocation2], 4
      %s15 = int_to_ptr.vmem [resolvable:$true] %s14
      %17 = dma.hbm_to_vmem [thread:$0]  %s0, 128, %s15, [#allocation3]
    $region5: #{tpu_custom_call.1} parent=1 // pred_fallthru
      _
    // Predicated region
    $region6: #{tpu_custom_call.1} parent=1 // pred_check
      _
    $region7: #{tpu_custom_call.1} parent=1 // pred_check_branch
      %19 = sbr.rel (0) target = $region9
    $region8: #{tpu_custom_call.1} parent=1 // pred_region
      %20 = dma.done [#allocation3], 128
    $region9: #{tpu_custom_call.1} parent=1 // pred_fallthru
      _
    %v21 = vld [vmem:[#allocation2] sm:$0xff]
    %22 = vrot.lane.b32.xlu0 %v21, 1
    %v23 = vpop.permute.xlu0 %22
    %24 = vst [vmem:[#allocation5] sm:$0xff] %v23
    // Predicated region
    $region10: #{tpu_custom_call.1} parent=1 // pred_check
      _
    $region11: #{tpu_custom_call.1} parent=1 // pred_check_branch
      %26 = sbr.rel (0) target = $region13
    $region12: #{tpu_custom_call.1} parent=1 // pred_region
      %s28 = ssub.s32 128, 128
      %29 = vsyncadd [#allocation4], %s28
      %s31 = sshll.u32 [#allocation5], 4
      %s32 = int_to_ptr.vmem [resolvable:$true] %s31
      %34 = dma.vmem_to_hbm [thread:$0]  %s32, 128, %s1, [#allocation4]
    $region13: #{tpu_custom_call.1} parent=1 // pred_fallthru
      _
    // Predicated region
    $region14: #{tpu_custom_call.1} parent=1 // pred_check
      _
    $region15: #{tpu_custom_call.1} parent=1 // pred_check_branch
      %36 = sbr.rel (0) target = $region17
    $region16: #{tpu_custom_call.1} parent=1 // pred_region
      %37 = dma.done [#allocation4], 128
    $region17: #{tpu_custom_call.1} parent=1 // pred_fallthru
      _
    %38 = vsyncpa [#allocation3], 1
    %39 = vsyncpa [#allocation4], 1

// kernel: tpu_custom_call.1
$region0: #{tpu_custom_call.1}
  #allocation0 [shape = 'u32[]', space=smem, size = 0x4, offset = 0x4, fixed_abs, tag = 'smem constant byte address 0x4 - core index']
  #allocation1 [shape = 'u32[144,128]{1,0:T(1,128)}', space=vmem, size = 0x12000, scoped, tag = 'internal scratch']
  %s0 = inlined_call_operand.hbm [shape: f32[8,128], index: 0, kind: input, shape index: {}]
  %s1 = inlined_call_operand.hbm [shape: f32[8,128], index: 1, kind: output, shape index: {}]
  %s2 = sld [smem:[#allocation0]]
  $region18: #{tpu_custom_call.1} parent=0
    _
  %s4 = ssub.s32 1, %s2
  %s5 = scalar_select 0, %s4, %s2
  $region1: #{tpu_custom_call.1} parent=0
    #allocation2 [shape = 'u8[4096]{0}', space=vmem, size = 0x1000, scoped, tag = 'input window, operand 0, single buffered']
    #allocation3 [shape = 's32[1]{0}', space=sflag, size = 0x4, scoped, tag = 'scoped memory for tpu_custom_call.1']
    #allocation4 [shape = 's32[1]{0}', space=sflag, size = 0x4, scoped, tag = 'scoped memory for tpu_custom_call.1']
    #allocation5 [shape = 'u8[4096]{0}', space=vmem, size = 0x1000, scoped, tag = 'output window, operand 0, single buffered']
    %6 = vsyncpa [#allocation3], 0
    %7 = vsyncpa [#allocation4], 0
    // Predicated region
    $region2: #{tpu_custom_call.1} parent=1 // pred_check
      _
    $region3: #{tpu_custom_call.1} parent=1 // pred_check_branch
      %9 = sbr.rel (0) target = $region5
    $region4: #{tpu_custom_call.1} parent=1 // pred_region
      %s11 = ssub.s32 128, 128
      %12 = vsyncadd [#allocation3], %s11
      %s14 = sshll.u32 [#allocation2], 4
      %s15 = int_to_ptr.vmem [resolvable:$true] %s14
      %17 = dma.hbm_to_vmem [thread:$0]  %s0, 128, %s15, [#allocation3]
    $region5: #{tpu_custom_call.1} parent=1 // pred_fallthru
      _
    // Predicated region
    $region6: #{tpu_custom_call.1} parent=1 // pred_check
      _
    $region7: #{tpu_custom_call.1} parent=1 // pred_check_branch
      %19 = sbr.rel (0) target = $region9
    $region8: #{tpu_custom_call.1} parent=1 // pred_region
      %20 = dma.done [#allocation3], 128
    $region9: #{tpu_custom_call.1} parent=1 // pred_fallthru
      _
    %v21 = vld [vmem:[#allocation2] sm:$0xff]
    %22 = vrot.lane.b32.xlu0 %v21, 1
    %v23 = vpop.permute.xlu0 %22
    %24 = vst [vmem:[#allocation5] sm:$0xff] %v23
    // Predicated region
    $region10: #{tpu_custom_call.1} parent=1 // pred_check
      _
    $region11: #{tpu_custom_call.1} parent=1 // pred_check_branch
      %26 = sbr.rel (0) target = $region13
    $region12: #{tpu_custom_call.1} parent=1 // pred_region
      %s28 = ssub.s32 128, 128
      %29 = vsyncadd [#allocation4], %s28
      %s31 = sshll.u32 [#allocation5], 4
      %s32 = int_to_ptr.vmem [resolvable:$true] %s31
      %34 = dma.vmem_to_hbm [thread:$0]  %s32, 128, %s1, [#allocation4]
    $region13: #{tpu_custom_call.1} parent=1 // pred_fallthru
      _
    // Predicated region
    $region14: #{tpu_custom_call.1} parent=1 // pred_check
      _
    $region15: #{tpu_custom_call.1} parent=1 // pred_check_branch
      %36 = sbr.rel (0) target = $region17
    $region16: #{tpu_custom_call.1} parent=1 // pred_region
      %37 = dma.done [#allocation4], 128
    $region17: #{tpu_custom_call.1} parent=1 // pred_fallthru
      _
    %38 = vsyncpa [#allocation3], 1
    %39 = vsyncpa [#allocation4], 1

</llo_original>
